<compile_context>
chip_gen: v7x
topology: tpu7x:2x2x1
jax: 0.10.0
libtpu: 0.0.40
codegen_flags: <defaults>
</compile_context>

<pallas_src>
import functools

import jax
import jax.numpy as jnp
import numpy as np
from jax.experimental import pallas as pl
from jax.experimental.pallas import tpu as pltpu

_LANE = 128
_DEFAULT_INPUT_BUDGET = 12 * 1024 * 1024   # double-buffered CAM bytes in VMEM


# --------------------------------------------------------------------------
# Tile-size helpers (static, wrapper-side)
# --------------------------------------------------------------------------
def _pick_b_tile(b, sublane=8, cap=128):
    """Divisor of b, multiple of `sublane` (labels/output are f32 -> 8),
    <= cap.  Prefer >= 2 steps on the parallel B axis so v7x can shard the
    grid across both TensorCores; fall back to a full-B block otherwise."""
    cands = [t for t in range(sublane, min(b, cap) + 1, sublane) if b % t == 0]
    split = [t for t in cands if b // t >= 2]
    if split:
        return max(split)
    if cands:
        return max(cands)
    return b                       # full-dim block (always legal, any dtype)


def _pick_h_tile(h, w, b_tile, itemsize, budget_bytes):
    """Full H if the double-buffered CAM blocks fit the budget, otherwise the
    largest sublane-aligned h tile that fits.  Grid uses cdiv + an in-kernel
    row mask, so no divisibility requirement on H."""
    per_h = 2 * 2 * b_tile * 2 * w * itemsize   # 2 cams x 2 bufs x 2 channels
    if per_h * h <= budget_bytes:
        return h
    hsub = max(8, 32 // itemsize)               # 8 for f32, 16 for bf16
    ht = max(hsub, (budget_bytes // per_h) // hsub * hsub)
    return min(h, ht)


# --------------------------------------------------------------------------
# Pallas kernel (factory closes over static shape parameters)
# --------------------------------------------------------------------------
def _make_exclus_kernel(H, W, HW, h_tile, b_tile):
    inv_hw = 1.0 / float(HW)
    ragged = (H % h_tile) != 0     # static: only then is the tail block partial

    def kernel(c1_ref, c2_ref, lab1_ref, lab2_ref, out_ref,
               a20, a21, a10, a11, amin, amax):
        # grid = (b_tiles, h_tiles); H (axis 1) is the reduction axis.
        h = pl.program_id(1)

        @pl.when(h == 0)
        def _init():
            zero = jnp.zeros_like(a20)
            a20[...] = zero
            a21[...] = zero
            a10[...] = zero
            a11[...] = zero
            amin[...] = zero
            amax[...] = zero

        # Native-dtype tiles straight from HBM; cast to f32 in registers.
        # c*_ref is (b_tile, 2, h_tile, W); channel slice is a leading-dim
        # index (no sublane gather, no layout tax).
        c1_bg = c1_ref[:, 0, :, :].astype(jnp.float32)
        c1_fg = c1_ref[:, 1, :, :].astype(jnp.float32)
        c2_bg = c2_ref[:, 0, :, :].astype(jnp.float32)
        c2_fg = c2_ref[:, 1, :, :].astype(jnp.float32)

        if ragged:
            # Partial edge block along H: out-of-bounds rows are unspecified
            # (possibly NaN), so mask the loaded tiles with exact zeros, which
            # are neutral for every accumulated sum below.
            row = h * h_tile + jax.lax.broadcasted_iota(
                jnp.int32, (b_tile, h_tile, W), 1)
            valid = row < H
            zero = jnp.zeros_like(c1_bg)
            c1_bg = jnp.where(valid, c1_bg, zero)
            c1_fg = jnp.where(valid, c1_fg, zero)
            c2_bg = jnp.where(valid, c2_bg, zero)
            c2_fg = jnp.where(valid, c2_fg, zero)

        w1 = 1.0 - c1_fg
        w2 = 1.0 - c2_fg

        # Raw per-(row, lane) partial sums only: VPU mul/add plus one sublane
        # reduce per stat.  The cross-lane reduce, the 1/HW scaling and all
        # exp/log happen once in the finalize below.
        a20[...] += jnp.sum(c2_bg * w1, axis=1)
        a21[...] += jnp.sum(c2_fg * w1, axis=1)
        a10[...] += jnp.sum(c1_bg * w2, axis=1)
        a11[...] += jnp.sum(c1_fg * w2, axis=1)
        amin[...] += jnp.sum(jnp.minimum(c1_fg, c2_fg), axis=1)
        amax[...] += jnp.sum(jnp.maximum(c1_fg, c2_fg), axis=1)

        @pl.when(h == pl.num_programs(1) - 1)
        def _finalize():
            lab1 = lab1_ref[...]                  # (b_tile, 1) in {0., 1.}
            lab2 = lab2_ref[...]

            l20 = jnp.sum(a20[...], axis=1, keepdims=True) * inv_hw
            l21 = jnp.sum(a21[...], axis=1, keepdims=True) * inv_hw
            l10 = jnp.sum(a10[...], axis=1, keepdims=True) * inv_hw
            l11 = jnp.sum(a11[...], axis=1, keepdims=True) * inv_hw
            min_r = jnp.sum(amin[...], axis=1, keepdims=True)
            max_r = jnp.sum(amax[...], axis=1, keepdims=True)

            def ce_rows(l0, l1, lab):             # per-row 2-class CE
                m = jnp.maximum(l0, l1)
                lse = m + jnp.log(jnp.exp(l0 - m) + jnp.exp(l1 - m))
                picked = lab * l1 + (1.0 - lab) * l0
                return lse - picked

            ce2 = ce_rows(l20, l21, lab2)
            ce1 = ce_rows(l10, l11, lab1)
            l2mx = lab2 * max_r                   # per-row lab2 * sum(max)

            # Pack per-row stats into lanes 0..4 of a lane-dense output block.
            lane = jax.lax.broadcasted_iota(jnp.int32, out_ref.shape, 1)
            out_ref[...] = (jnp.where(lane == 0, ce2, 0.0)
                            + jnp.where(lane == 1, ce1, 0.0)
                            + jnp.where(lane == 2, min_r, 0.0)
                            + jnp.where(lane == 3, l2mx, 0.0)
                            + jnp.where(lane == 4, lab2, 0.0))

    return kernel


# --------------------------------------------------------------------------
# Wrapper
# --------------------------------------------------------------------------
@functools.partial(jax.jit,
                   static_argnames=("size_average", "input_budget_bytes"))
def exclus_loss(cam1, cam2, label1, label2, size_average=True,
                input_budget_bytes=_DEFAULT_INPUT_BUDGET):
    """Forward pass of exclusLoss.  cam1/cam2: (B, 2, H, W); labels: (B,) int."""
    B, C, H, W = cam1.shape
    assert C == 2, "exclusLoss expects 2-channel CAMs"
    HW = H * W
    assert B == HW or B == 1, (
        "exclusLoss's loss2 broadcast ((B,) vs (B, H*W)) requires B == H*W "
        f"(or B == 1); got B={B}, H*W={HW}")

    # Only the labels are touched wrapper-side (tiny); the CAMs stream to the
    # kernel untouched, in their native dtype and layout.
    lab1 = label1.reshape(B, 1).astype(jnp.float32)
    lab2 = label2.reshape(B, 1).astype(jnp.float32)

    itemsize = jnp.dtype(cam1.dtype).itemsize
    b_tile = _pick_b_tile(B, sublane=8, cap=128)
    h_tile = _pick_h_tile(H, W, b_tile, itemsize, input_budget_bytes)
    nb = B // b_tile
    nh = -(-H // h_tile)                          # cdiv; tail masked in-kernel

    cam_spec = pl.BlockSpec((b_tile, 2, h_tile, W), lambda b, h: (b, 0, h, 0))
    lab_spec = pl.BlockSpec((b_tile, 1), lambda b, h: (b, 0))
    out_spec = pl.BlockSpec((b_tile, _LANE), lambda b, h: (b, 0))

    # Only degenerate shapes (gigantic W with tiny B) can exceed the scoped
    # VMEM default; request a larger limit explicitly in that case.
    blk_bytes = b_tile * 2 * h_tile * W * itemsize
    est_vmem = (2 * 2 * blk_bytes                     # 2 cams, double-buffered
                + 6 * b_tile * W * 4                  # accumulators
                + 2 * 2 * b_tile * 4                  # labels
                + 2 * b_tile * _LANE * 4)             # output
    cp_kwargs = dict(dimension_semantics=("parallel", "arbitrary"))
    if est_vmem > 14 * 1024 * 1024:
        cp_kwargs["vmem_limit_bytes"] = int(est_vmem * 1.25)

    cost = pl.CostEstimate(
        flops=int(14 * B * HW + 32 * B),
        transcendentals=int(6 * B),
        bytes_accessed=int(2 * B * 2 * HW * itemsize + 2 * B * 4
                           + B * _LANE * 4))

    stats = pl.pallas_call(
        _make_exclus_kernel(H, W, HW, h_tile, b_tile),
        out_shape=jax.ShapeDtypeStruct((B, _LANE), jnp.float32),
        grid_spec=pltpu.PrefetchScalarGridSpec(
            num_scalar_prefetch=0,
            grid=(nb, nh),
            in_specs=[cam_spec, cam_spec, lab_spec, lab_spec],
            out_specs=out_spec,
            scratch_shapes=[pltpu.VMEM((b_tile, W), jnp.float32)] * 6,
        ),
        compiler_params=pltpu.CompilerParams(**cp_kwargs),
        cost_estimate=cost,
    )(cam1, cam2, lab1, lab2)

    # Tiny O(B) epilogue: combine per-row stats, fold loss2 algebraically.
    ce2_sum = jnp.sum(stats[:, 0])
    ce1_sum = jnp.sum(stats[:, 1])
    min_sum = jnp.sum(stats[:, 2])          # sum over all rows/pixels of min
    l2max_sum = jnp.sum(stats[:, 3])        # sum of lab2 * rowsum(max)
    lab2_sum = jnp.sum(stats[:, 4])

    loss1 = (ce2_sum + 0.1 * ce1_sum) / B
    # Broadcast-sum of the per-row means over the trailing axis:
    #   B == HW  ->  sum_j mean_j = sum(min)/HW ;  B == 1 -> HW*mean = sum(min)
    bscale = (1.0 / HW) if B == HW else 1.0
    mean_loss2 = (lab2_sum * min_sum * bscale - 0.1 * l2max_sum) / (B * HW)
    mean_loss = loss1 + 0.1 * mean_loss2

    if size_average:
        return mean_loss
    # loss.sum() over the broadcast (B, HW) loss map of the original module.
    return mean_loss * float(B * HW)


# --------------------------------------------------------------------------
# Pure-JAX reference (direct transcription of the PyTorch forward)
# --------------------------------------------------------------------------
def exclus_loss_ref(cam1, cam2, label1, label2):
    cam_1 = cam1[:, 1:2, :, :]
    cam_2 = cam2[:, 1:2, :, :]
    cl2_ = jnp.mean(cam2 * (1.0 - cam_1), axis=(2, 3)).reshape(-1, 2)
    cl1_ = jnp.mean(cam1 * (1.0 - cam_2), axis=(2, 3)).reshape(-1, 2)

    def ce(logits, labels):
        lse = jax.scipy.special.logsumexp(logits, axis=1)
        picked = jnp.take_along_axis(logits, labels[:, None], axis=1)[:, 0]
        return jnp.mean(lse - picked)

    loss1 = ce(cl2_, label2) + 0.1 * ce(cl1_, label1)
    B = cam1.shape[0]
    c1 = cam_1.reshape(B, -1)
    c2 = cam_2.reshape(B, -1)
    lab2 = label2.reshape(-1)[:, None].astype(cam1.dtype)
    loss2 = lab2 * (jnp.minimum(c1, c2).mean(axis=1) - 0.1 * jnp.maximum(c1, c2))
    loss = loss1 + 0.1 * loss2
    return jnp.mean(loss)


# --------------------------------------------------------------------------
if __name__ == "__main__":
    key = jax.random.PRNGKey(0)
    k1, k2, k3, k4, k5, k6 = jax.random.split(key, 6)

    # Case 1: B must equal H*W for the original module's broadcast to be valid.
    B, C, H, W = 16, 2, 4, 4
    cam1 = jax.random.uniform(k1, (B, C, H, W), dtype=jnp.float32)
    cam2 = jax.random.uniform(k2, (B, C, H, W), dtype=jnp.float32)
    label1 = jax.random.randint(k3, (B,), 0, 2, dtype=jnp.int32)
    label2 = jax.random.randint(k4, (B,), 0, 2, dtype=jnp.int32)

    loss = jax.block_until_ready(exclus_loss(cam1, cam2, label1, label2))
    ref = jax.block_until_ready(exclus_loss_ref(cam1, cam2, label1, label2))
    np.testing.assert_allclose(np.asarray(loss), np.asarray(ref),
                               rtol=1e-5, atol=1e-5)

    # Case 2: B == 1 branch; a tiny VMEM budget forces H tiling (nh > 1) and a
    # ragged tail so the multi-step accumulation + row-mask paths are exercised.
    B2, H2, W2 = 1, 20, 8
    cam1b = jax.random.uniform(k5, (B2, 2, H2, W2), dtype=jnp.float32)
    cam2b = jax.random.uniform(k6, (B2, 2, H2, W2), dtype=jnp.float32)
    l1b = jnp.array([1], dtype=jnp.int32)
    l2b = jnp.array([1], dtype=jnp.int32)
    loss2_ = jax.block_until_ready(
        exclus_loss(cam1b, cam2b, l1b, l2b, input_budget_bytes=4096))
    ref2_ = jax.block_until_ready(exclus_loss_ref(cam1b, cam2b, l1b, l2b))
    np.testing.assert_allclose(np.asarray(loss2_), np.asarray(ref2_),
                               rtol=1e-5, atol=1e-5)

    print("KERNEL_OK")
</pallas_src>

<mosaic_0001>
module attributes {stable_mosaic.version = 11 : i64} {
  func.func @kernel(%arg0: i32, %arg1: i32, %arg2: memref<8x2x4x4xf32, #tpu.memory_space<vmem>>, %arg3: memref<8x2x4x4xf32, #tpu.memory_space<vmem>>, %arg4: memref<8x1xf32, #tpu.memory_space<vmem>>, %arg5: memref<8x1xf32, #tpu.memory_space<vmem>>, %arg6: memref<8x128xf32, #tpu.memory_space<vmem>>, %arg7: memref<8x4xf32, #tpu.memory_space<vmem>>, %arg8: memref<8x4xf32, #tpu.memory_space<vmem>>, %arg9: memref<8x4xf32, #tpu.memory_space<vmem>>, %arg10: memref<8x4xf32, #tpu.memory_space<vmem>>, %arg11: memref<8x4xf32, #tpu.memory_space<vmem>>, %arg12: memref<8x4xf32, #tpu.memory_space<vmem>>) attributes {dimension_semantics = [#tpu.dimension_semantics<parallel>, #tpu.dimension_semantics<arbitrary>], iteration_bounds = array<i64: 2, 1>, scalar_prefetch = 0 : i64, scratch_operands = 6 : i64, tpu.core_type = #tpu.core_type<tc>, window_params = [{transform_indices = @transform_0, window_bounds = array<i64: 8, 2, 4, 4>}, {transform_indices = @transform_1, window_bounds = array<i64: 8, 2, 4, 4>}, {transform_indices = @transform_2, window_bounds = array<i64: 8, 1>}, {transform_indices = @transform_3, window_bounds = array<i64: 8, 1>}, {transform_indices = @transform_4, window_bounds = array<i64: 8, 128>}]} {
    %c0_i32 = arith.constant 0 : i32
    %0 = arith.cmpi eq, %arg1, %c0_i32 : i32
    %1 = arith.extui %0 : i1 to i32
    %c0_i32_0 = arith.constant 0 : i32
    %2 = arith.cmpi ne, %1, %c0_i32_0 : i32
    scf.if %2 {
      %cst_48 = arith.constant 0.000000e+00 : f32
      %48 = vector.broadcast %cst_48 : f32 to vector<8x4xf32>
      %c0_49 = arith.constant 0 : index
      %c0_50 = arith.constant 0 : index
      %49 = vector.load %arg7[%c0_49, %c0_50] : memref<8x4xf32, #tpu.memory_space<vmem>>, vector<8x4xf32>
      tpu.vector_store %arg7[%c0_49, %c0_50], %48 {strides = array<i32>} : memref<8x4xf32, #tpu.memory_space<vmem>>, vector<8x4xf32>,
      %c0_51 = arith.constant 0 : index
      %c0_52 = arith.constant 0 : index
      %50 = vector.load %arg8[%c0_51, %c0_52] : memref<8x4xf32, #tpu.memory_space<vmem>>, vector<8x4xf32>
      tpu.vector_store %arg8[%c0_51, %c0_52], %48 {strides = array<i32>} : memref<8x4xf32, #tpu.memory_space<vmem>>, vector<8x4xf32>,
      %c0_53 = arith.constant 0 : index
      %c0_54 = arith.constant 0 : index
      %51 = vector.load %arg9[%c0_53, %c0_54] : memref<8x4xf32, #tpu.memory_space<vmem>>, vector<8x4xf32>
      tpu.vector_store %arg9[%c0_53, %c0_54], %48 {strides = array<i32>} : memref<8x4xf32, #tpu.memory_space<vmem>>, vector<8x4xf32>,
      %c0_55 = arith.constant 0 : index
      %c0_56 = arith.constant 0 : index
      %52 = vector.load %arg10[%c0_55, %c0_56] : memref<8x4xf32, #tpu.memory_space<vmem>>, vector<8x4xf32>
      tpu.vector_store %arg10[%c0_55, %c0_56], %48 {strides = array<i32>} : memref<8x4xf32, #tpu.memory_space<vmem>>, vector<8x4xf32>,
      %c0_57 = arith.constant 0 : index
      %c0_58 = arith.constant 0 : index
      %53 = vector.load %arg11[%c0_57, %c0_58] : memref<8x4xf32, #tpu.memory_space<vmem>>, vector<8x4xf32>
      tpu.vector_store %arg11[%c0_57, %c0_58], %48 {strides = array<i32>} : memref<8x4xf32, #tpu.memory_space<vmem>>, vector<8x4xf32>,
      %c0_59 = arith.constant 0 : index
      %c0_60 = arith.constant 0 : index
      %54 = vector.load %arg12[%c0_59, %c0_60] : memref<8x4xf32, #tpu.memory_space<vmem>>, vector<8x4xf32>
      tpu.vector_store %arg12[%c0_59, %c0_60], %48 {strides = array<i32>} : memref<8x4xf32, #tpu.memory_space<vmem>>, vector<8x4xf32>,
    } else {
    }
    %c0 = arith.constant 0 : index
    %c0_1 = arith.constant 0 : index
    %c0_2 = arith.constant 0 : index
    %c0_3 = arith.constant 0 : index
    %3 = vector.load %arg2[%c0, %c0_1, %c0_2, %c0_3] : memref<8x2x4x4xf32, #tpu.memory_space<vmem>>, vector<8x1x4x4xf32>
    %4 = vector.shape_cast %3 : vector<8x1x4x4xf32> to vector<8x4x4xf32>
    %c0_4 = arith.constant 0 : index
    %c1 = arith.constant 1 : index
    %c0_5 = arith.constant 0 : index
    %c0_6 = arith.constant 0 : index
    %5 = vector.load %arg2[%c0_4, %c1, %c0_5, %c0_6] : memref<8x2x4x4xf32, #tpu.memory_space<vmem>>, vector<8x1x4x4xf32>
    %6 = vector.shape_cast %5 : vector<8x1x4x4xf32> to vector<8x4x4xf32>
    %c0_7 = arith.constant 0 : index
    %c0_8 = arith.constant 0 : index
    %c0_9 = arith.constant 0 : index
    %c0_10 = arith.constant 0 : index
    %7 = vector.load %arg3[%c0_7, %c0_8, %c0_9, %c0_10] : memref<8x2x4x4xf32, #tpu.memory_space<vmem>>, vector<8x1x4x4xf32>
    %8 = vector.shape_cast %7 : vector<8x1x4x4xf32> to vector<8x4x4xf32>
    %c0_11 = arith.constant 0 : index
    %c1_12 = arith.constant 1 : index
    %c0_13 = arith.constant 0 : index
    %c0_14 = arith.constant 0 : index
    %9 = vector.load %arg3[%c0_11, %c1_12, %c0_13, %c0_14] : memref<8x2x4x4xf32, #tpu.memory_space<vmem>>, vector<8x1x4x4xf32>
    %10 = vector.shape_cast %9 : vector<8x1x4x4xf32> to vector<8x4x4xf32>
    %cst = arith.constant 1.000000e+00 : f32
    %11 = vector.broadcast %cst : f32 to vector<8x4x4xf32>
    %12 = arith.subf %11, %6 : vector<8x4x4xf32>
    %cst_15 = arith.constant 1.000000e+00 : f32
    %13 = vector.broadcast %cst_15 : f32 to vector<8x4x4xf32>
    %14 = arith.subf %13, %10 : vector<8x4x4xf32>
    %c0_16 = arith.constant 0 : index
    %c0_17 = arith.constant 0 : index
    %15 = vector.load %arg7[%c0_16, %c0_17] : memref<8x4xf32, #tpu.memory_space<vmem>>, vector<8x4xf32>
    %16 = arith.mulf %8, %12 : vector<8x4x4xf32>
    %cst_18 = arith.constant dense<0.000000e+00> : vector<8x4xf32>
    %17 = vector.multi_reduction <add>, %16, %cst_18 [1] : vector<8x4x4xf32> to vector<8x4xf32>
    %18 = arith.addf %15, %17 : vector<8x4xf32>
    %c0_19 = arith.constant 0 : index
    %c0_20 = arith.constant 0 : index
    %19 = vector.load %arg7[%c0_19, %c0_20] : memref<8x4xf32, #tpu.memory_space<vmem>>, vector<8x4xf32>
    tpu.vector_store %arg7[%c0_19, %c0_20], %18 {strides = array<i32>} : memref<8x4xf32, #tpu.memory_space<vmem>>, vector<8x4xf32>,
    %c0_21 = arith.constant 0 : index
    %c0_22 = arith.constant 0 : index
    %20 = vector.load %arg8[%c0_21, %c0_22] : memref<8x4xf32, #tpu.memory_space<vmem>>, vector<8x4xf32>
    %21 = arith.mulf %10, %12 : vector<8x4x4xf32>
    %cst_23 = arith.constant dense<0.000000e+00> : vector<8x4xf32>
    %22 = vector.multi_reduction <add>, %21, %cst_23 [1] : vector<8x4x4xf32> to vector<8x4xf32>
    %23 = arith.addf %20, %22 : vector<8x4xf32>
    %c0_24 = arith.constant 0 : index
    %c0_25 = arith.constant 0 : index
    %24 = vector.load %arg8[%c0_24, %c0_25] : memref<8x4xf32, #tpu.memory_space<vmem>>, vector<8x4xf32>
    tpu.vector_store %arg8[%c0_24, %c0_25], %23 {strides = array<i32>} : memref<8x4xf32, #tpu.memory_space<vmem>>, vector<8x4xf32>,
    %c0_26 = arith.constant 0 : index
    %c0_27 = arith.constant 0 : index
    %25 = vector.load %arg9[%c0_26, %c0_27] : memref<8x4xf32, #tpu.memory_space<vmem>>, vector<8x4xf32>
    %26 = arith.mulf %4, %14 : vector<8x4x4xf32>
    %cst_28 = arith.constant dense<0.000000e+00> : vector<8x4xf32>
    %27 = vector.multi_reduction <add>, %26, %cst_28 [1] : vector<8x4x4xf32> to vector<8x4xf32>
    %28 = arith.addf %25, %27 : vector<8x4xf32>
    %c0_29 = arith.constant 0 : index
    %c0_30 = arith.constant 0 : index
    %29 = vector.load %arg9[%c0_29, %c0_30] : memref<8x4xf32, #tpu.memory_space<vmem>>, vector<8x4xf32>
    tpu.vector_store %arg9[%c0_29, %c0_30], %28 {strides = array<i32>} : memref<8x4xf32, #tpu.memory_space<vmem>>, vector<8x4xf32>,
    %c0_31 = arith.constant 0 : index
    %c0_32 = arith.constant 0 : index
    %30 = vector.load %arg10[%c0_31, %c0_32] : memref<8x4xf32, #tpu.memory_space<vmem>>, vector<8x4xf32>
    %31 = arith.mulf %6, %14 : vector<8x4x4xf32>
    %cst_33 = arith.constant dense<0.000000e+00> : vector<8x4xf32>
    %32 = vector.multi_reduction <add>, %31, %cst_33 [1] : vector<8x4x4xf32> to vector<8x4xf32>
    %33 = arith.addf %30, %32 : vector<8x4xf32>
    %c0_34 = arith.constant 0 : index
    %c0_35 = arith.constant 0 : index
    %34 = vector.load %arg10[%c0_34, %c0_35] : memref<8x4xf32, #tpu.memory_space<vmem>>, vector<8x4xf32>
    tpu.vector_store %arg10[%c0_34, %c0_35], %33 {strides = array<i32>} : memref<8x4xf32, #tpu.memory_space<vmem>>, vector<8x4xf32>,
    %c0_36 = arith.constant 0 : index
    %c0_37 = arith.constant 0 : index
    %35 = vector.load %arg11[%c0_36, %c0_37] : memref<8x4xf32, #tpu.memory_space<vmem>>, vector<8x4xf32>
    %36 = arith.minimumf %6, %10 : vector<8x4x4xf32>
    %cst_38 = arith.constant dense<0.000000e+00> : vector<8x4xf32>
    %37 = vector.multi_reduction <add>, %36, %cst_38 [1] : vector<8x4x4xf32> to vector<8x4xf32>
    %38 = arith.addf %35, %37 : vector<8x4xf32>
    %c0_39 = arith.constant 0 : index
    %c0_40 = arith.constant 0 : index
    %39 = vector.load %arg11[%c0_39, %c0_40] : memref<8x4xf32, #tpu.memory_space<vmem>>, vector<8x4xf32>
    tpu.vector_store %arg11[%c0_39, %c0_40], %38 {strides = array<i32>} : memref<8x4xf32, #tpu.memory_space<vmem>>, vector<8x4xf32>,
    %c0_41 = arith.constant 0 : index
    %c0_42 = arith.constant 0 : index
    %40 = vector.load %arg12[%c0_41, %c0_42] : memref<8x4xf32, #tpu.memory_space<vmem>>, vector<8x4xf32>
    %41 = arith.maximumf %6, %10 : vector<8x4x4xf32>
    %cst_43 = arith.constant dense<0.000000e+00> : vector<8x4xf32>
    %42 = vector.multi_reduction <add>, %41, %cst_43 [1] : vector<8x4x4xf32> to vector<8x4xf32>
    %43 = arith.addf %40, %42 : vector<8x4xf32>
    %c0_44 = arith.constant 0 : index
    %c0_45 = arith.constant 0 : index
    %44 = vector.load %arg12[%c0_44, %c0_45] : memref<8x4xf32, #tpu.memory_space<vmem>>, vector<8x4xf32>
    tpu.vector_store %arg12[%c0_44, %c0_45], %43 {strides = array<i32>} : memref<8x4xf32, #tpu.memory_space<vmem>>, vector<8x4xf32>,
    %c0_i32_46 = arith.constant 0 : i32
    %45 = arith.cmpi eq, %arg1, %c0_i32_46 : i32
    %46 = arith.extui %45 : i1 to i32
    %c0_i32_47 = arith.constant 0 : i32
    %47 = arith.cmpi ne, %46, %c0_i32_47 : i32
    scf.if %47 {
      %c0_48 = arith.constant 0 : index
      %c0_49 = arith.constant 0 : index
      %48 = vector.load %arg4[%c0_48, %c0_49] : memref<8x1xf32, #tpu.memory_space<vmem>>, vector<8x1xf32>
      %c0_50 = arith.constant 0 : index
      %c0_51 = arith.constant 0 : index
      %49 = vector.load %arg5[%c0_50, %c0_51] : memref<8x1xf32, #tpu.memory_space<vmem>>, vector<8x1xf32>
      %c0_52 = arith.constant 0 : index
      %c0_53 = arith.constant 0 : index
      %50 = vector.load %arg7[%c0_52, %c0_53] : memref<8x4xf32, #tpu.memory_space<vmem>>, vector<8x4xf32>
      %cst_54 = arith.constant dense<0.000000e+00> : vector<8xf32>
      %51 = vector.multi_reduction <add>, %50, %cst_54 [1] : vector<8x4xf32> to vector<8xf32>
      %52 = vector.shape_cast %51 : vector<8xf32> to vector<8x1xf32>
      %cst_55 = arith.constant 6.250000e-02 : f32
      %53 = vector.broadcast %cst_55 : f32 to vector<8x1xf32>
      %54 = arith.mulf %52, %53 : vector<8x1xf32>
      %c0_56 = arith.constant 0 : index
      %c0_57 = arith.constant 0 : index
      %55 = vector.load %arg8[%c0_56, %c0_57] : memref<8x4xf32, #tpu.memory_space<vmem>>, vector<8x4xf32>
      %cst_58 = arith.constant dense<0.000000e+00> : vector<8xf32>
      %56 = vector.multi_reduction <add>, %55, %cst_58 [1] : vector<8x4xf32> to vector<8xf32>
      %57 = vector.shape_cast %56 : vector<8xf32> to vector<8x1xf32>
      %cst_59 = arith.constant 6.250000e-02 : f32
      %58 = vector.broadcast %cst_59 : f32 to vector<8x1xf32>
      %59 = arith.mulf %57, %58 : vector<8x1xf32>
      %c0_60 = arith.constant 0 : index
      %c0_61 = arith.constant 0 : index
      %60 = vector.load %arg9[%c0_60, %c0_61] : memref<8x4xf32, #tpu.memory_space<vmem>>, vector<8x4xf32>
      %cst_62 = arith.constant dense<0.000000e+00> : vector<8xf32>
      %61 = vector.multi_reduction <add>, %60, %cst_62 [1] : vector<8x4xf32> to vector<8xf32>
      %62 = vector.shape_cast %61 : vector<8xf32> to vector<8x1xf32>
      %cst_63 = arith.constant 6.250000e-02 : f32
      %63 = vector.broadcast %cst_63 : f32 to vector<8x1xf32>
      %64 = arith.mulf %62, %63 : vector<8x1xf32>
      %c0_64 = arith.constant 0 : index
      %c0_65 = arith.constant 0 : index
      %65 = vector.load %arg10[%c0_64, %c0_65] : memref<8x4xf32, #tpu.memory_space<vmem>>, vector<8x4xf32>
      %cst_66 = arith.constant dense<0.000000e+00> : vector<8xf32>
      %66 = vector.multi_reduction <add>, %65, %cst_66 [1] : vector<8x4xf32> to vector<8xf32>
      %67 = vector.shape_cast %66 : vector<8xf32> to vector<8x1xf32>
      %cst_67 = arith.constant 6.250000e-02 : f32
      %68 = vector.broadcast %cst_67 : f32 to vector<8x1xf32>
      %69 = arith.mulf %67, %68 : vector<8x1xf32>
      %c0_68 = arith.constant 0 : index
      %c0_69 = arith.constant 0 : index
      %70 = vector.load %arg11[%c0_68, %c0_69] : memref<8x4xf32, #tpu.memory_space<vmem>>, vector<8x4xf32>
      %cst_70 = arith.constant dense<0.000000e+00> : vector<8xf32>
      %71 = vector.multi_reduction <add>, %70, %cst_70 [1] : vector<8x4xf32> to vector<8xf32>
      %72 = vector.shape_cast %71 : vector<8xf32> to vector<8x1xf32>
      %c0_71 = arith.constant 0 : index
      %c0_72 = arith.constant 0 : index
      %73 = vector.load %arg12[%c0_71, %c0_72] : memref<8x4xf32, #tpu.memory_space<vmem>>, vector<8x4xf32>
      %cst_73 = arith.constant dense<0.000000e+00> : vector<8xf32>
      %74 = vector.multi_reduction <add>, %73, %cst_73 [1] : vector<8x4xf32> to vector<8xf32>
      %75 = vector.shape_cast %74 : vector<8xf32> to vector<8x1xf32>
      %76 = arith.maximumf %54, %59 : vector<8x1xf32>
      %77 = arith.subf %54, %76 : vector<8x1xf32>
      %78 = math.exp %77 : vector<8x1xf32>
      %79 = arith.subf %59, %76 : vector<8x1xf32>
      %80 = math.exp %79 : vector<8x1xf32>
      %81 = arith.addf %78, %80 : vector<8x1xf32>
      %82 = math.log %81 : vector<8x1xf32>
      %83 = arith.addf %76, %82 : vector<8x1xf32>
      %84 = arith.mulf %49, %59 : vector<8x1xf32>
      %cst_74 = arith.constant 1.000000e+00 : f32
      %85 = vector.broadcast %cst_74 : f32 to vector<8x1xf32>
      %86 = arith.subf %85, %49 : vector<8x1xf32>
      %87 = arith.mulf %86, %54 : vector<8x1xf32>
      %88 = arith.addf %84, %87 : vector<8x1xf32>
      %89 = arith.subf %83, %88 : vector<8x1xf32>
      %90 = arith.maximumf %64, %69 : vector<8x1xf32>
      %91 = arith.subf %64, %90 : vector<8x1xf32>
      %92 = math.exp %91 : vector<8x1xf32>
      %93 = arith.subf %69, %90 : vector<8x1xf32>
      %94 = math.exp %93 : vector<8x1xf32>
      %95 = arith.addf %92, %94 : vector<8x1xf32>
      %96 = math.log %95 : vector<8x1xf32>
      %97 = arith.addf %90, %96 : vector<8x1xf32>
      %98 = arith.mulf %48, %69 : vector<8x1xf32>
      %cst_75 = arith.constant 1.000000e+00 : f32
      %99 = vector.broadcast %cst_75 : f32 to vector<8x1xf32>
      %100 = arith.subf %99, %48 : vector<8x1xf32>
      %101 = arith.mulf %100, %64 : vector<8x1xf32>
      %102 = arith.addf %98, %101 : vector<8x1xf32>
      %103 = arith.subf %97, %102 : vector<8x1xf32>
      %104 = arith.mulf %49, %75 : vector<8x1xf32>
      %105 = tpu.iota {dimensions = array<i32: 1>} : vector<8x128xi32>
      %c0_i32_76 = arith.constant 0 : i32
      %106 = vector.broadcast %c0_i32_76 : i32 to vector<8x128xi32>
      %107 = arith.cmpi eq, %105, %106 : vector<8x128xi32>
      %cst_77 = arith.constant 0.000000e+00 : f32
      %108 = vector.shape_cast %89 : vector<8x1xf32> to vector<8x1xf32>
      %109 = vector.broadcast %108 : vector<8x1xf32> to vector<8x128xf32>
      %110 = vector.broadcast %cst_77 : f32 to vector<8x128xf32>
      %111 = arith.select %107, %109, %110 : vector<8x128xi1>, vector<8x128xf32>
      %c1_i32 = arith.constant 1 : i32
      %112 = vector.broadcast %c1_i32 : i32 to vector<8x128xi32>
      %113 = arith.cmpi eq, %105, %112 : vector<8x128xi32>
      %cst_78 = arith.constant 0.000000e+00 : f32
      %114 = vector.shape_cast %103 : vector<8x1xf32> to vector<8x1xf32>
      %115 = vector.broadcast %114 : vector<8x1xf32> to vector<8x128xf32>
      %116 = vector.broadcast %cst_78 : f32 to vector<8x128xf32>
      %117 = arith.select %113, %115, %116 : vector<8x128xi1>, vector<8x128xf32>
      %118 = arith.addf %111, %117 : vector<8x128xf32>
      %c2_i32 = arith.constant 2 : i32
      %119 = vector.broadcast %c2_i32 : i32 to vector<8x128xi32>
      %120 = arith.cmpi eq, %105, %119 : vector<8x128xi32>
      %cst_79 = arith.constant 0.000000e+00 : f32
      %121 = vector.shape_cast %72 : vector<8x1xf32> to vector<8x1xf32>
      %122 = vector.broadcast %121 : vector<8x1xf32> to vector<8x128xf32>
      %123 = vector.broadcast %cst_79 : f32 to vector<8x128xf32>
      %124 = arith.select %120, %122, %123 : vector<8x128xi1>, vector<8x128xf32>
      %125 = arith.addf %118, %124 : vector<8x128xf32>
      %c3_i32 = arith.constant 3 : i32
      %126 = vector.broadcast %c3_i32 : i32 to vector<8x128xi32>
      %127 = arith.cmpi eq, %105, %126 : vector<8x128xi32>
      %cst_80 = arith.constant 0.000000e+00 : f32
      %128 = vector.shape_cast %104 : vector<8x1xf32> to vector<8x1xf32>
      %129 = vector.broadcast %128 : vector<8x1xf32> to vector<8x128xf32>
      %130 = vector.broadcast %cst_80 : f32 to vector<8x128xf32>
      %131 = arith.select %127, %129, %130 : vector<8x128xi1>, vector<8x128xf32>
      %132 = arith.addf %125, %131 : vector<8x128xf32>
      %c4_i32 = arith.constant 4 : i32
      %133 = vector.broadcast %c4_i32 : i32 to vector<8x128xi32>
      %134 = arith.cmpi eq, %105, %133 : vector<8x128xi32>
      %cst_81 = arith.constant 0.000000e+00 : f32
      %135 = vector.shape_cast %49 : vector<8x1xf32> to vector<8x1xf32>
      %136 = vector.broadcast %135 : vector<8x1xf32> to vector<8x128xf32>
      %137 = vector.broadcast %cst_81 : f32 to vector<8x128xf32>
      %138 = arith.select %134, %136, %137 : vector<8x128xi1>, vector<8x128xf32>
      %139 = arith.addf %132, %138 : vector<8x128xf32>
      %c0_82 = arith.constant 0 : index
      %c0_83 = arith.constant 0 : index
      %140 = vector.load %arg6[%c0_82, %c0_83] : memref<8x128xf32, #tpu.memory_space<vmem>>, vector<8x128xf32>
      tpu.vector_store %arg6[%c0_82, %c0_83], %139 {strides = array<i32>} : memref<8x128xf32, #tpu.memory_space<vmem>>, vector<8x128xf32>,
    } else {
    }
    return
  }
  func.func @transform_0(%arg0: i32, %arg1: i32) -> (i32, i32, i32, i32) {
    %c0_i32 = arith.constant 0 : i32
    %c0_i32_0 = arith.constant 0 : i32
    %c0_i32_1 = arith.constant 0 : i32
    return %arg0, %c0_i32, %arg1, %c0_i32_0 : i32, i32, i32, i32
  }
  func.func @transform_1(%arg0: i32, %arg1: i32) -> (i32, i32, i32, i32) {
    %c0_i32 = arith.constant 0 : i32
    %c0_i32_0 = arith.constant 0 : i32
    %c0_i32_1 = arith.constant 0 : i32
    return %arg0, %c0_i32, %arg1, %c0_i32_0 : i32, i32, i32, i32
  }
  func.func @transform_2(%arg0: i32, %arg1: i32) -> (i32, i32) {
    %c0_i32 = arith.constant 0 : i32
    %c0_i32_0 = arith.constant 0 : i32
    return %arg0, %c0_i32 : i32, i32
  }
  func.func @transform_3(%arg0: i32, %arg1: i32) -> (i32, i32) {
    %c0_i32 = arith.constant 0 : i32
    %c0_i32_0 = arith.constant 0 : i32
    return %arg0, %c0_i32 : i32, i32
  }
  func.func @transform_4(%arg0: i32, %arg1: i32) -> (i32, i32) {
    %c0_i32 = arith.constant 0 : i32
    %c0_i32_0 = arith.constant 0 : i32
    return %arg0, %c0_i32 : i32, i32
  }
}

</mosaic_0001>

<llo_original>
// kernel: exclus_loss.1
$region0: #{exclus_loss.1}
  #allocation0 [shape = 'u32[]', space=smem, size = 0x4, offset = 0x4, fixed_abs, tag = 'smem constant byte address 0x4 - core index']
  #allocation1 [shape = 'u32[144,128]{1,0:T(1,128)}', space=vmem, size = 0x12000, scoped, tag = 'internal scratch']
  #allocation2 [shape = 'f32[8,4]{1,0:T(8,128)}', space=vmem, size = 0x1000, scoped, tag = 'scratch operand']
  #allocation3 [shape = 'f32[8,4]{1,0:T(8,128)}', space=vmem, size = 0x1000, scoped, tag = 'scratch operand']
  #allocation4 [shape = 'f32[8,4]{1,0:T(8,128)}', space=vmem, size = 0x1000, scoped, tag = 'scratch operand']
  #allocation5 [shape = 'f32[8,4]{1,0:T(8,128)}', space=vmem, size = 0x1000, scoped, tag = 'scratch operand']
  #allocation6 [shape = 'f32[8,4]{1,0:T(8,128)}', space=vmem, size = 0x1000, scoped, tag = 'scratch operand']
  #allocation7 [shape = 'f32[8,4]{1,0:T(8,128)}', space=vmem, size = 0x1000, scoped, tag = 'scratch operand']
  %s0 = inlined_call_operand.vmem [shape: f32[16,2,4,4], index: 0, kind: input, shape index: {}]
  %s1 = inlined_call_operand.vmem [shape: f32[16,2,4,4], index: 1, kind: input, shape index: {}]
  %s2 = inlined_call_operand.vmem [shape: f32[16,1], index: 2, kind: input, shape index: {}]
  %s3 = inlined_call_operand.vmem [shape: f32[16,1], index: 3, kind: input, shape index: {}]
  %s4 = inlined_call_operand.vmem [shape: f32[16,128], index: 4, kind: output, shape index: {}]
  %s5 = sld [smem:[#allocation0]]
  $region57: #{exclus_loss.1} parent=0
    _
  %s7 = ssub.s32 1, %s5
  %s8 = scalar_select 0, %s7, %s5
  loop: start=0, step=1, limit=4
  $region2: #{exclus_loss.1} parent=0 // loop_pre_header
    _
  $region3: #{exclus_loss.1} parent=0 // loop_header
    %s10 = sphi 0, %s14
    %p11 = scmp.ge.s32.totalorder %s10, 4
    %s17 = sphi 0, %s29
    %s18 = sphi 0, %s25
    %s19 = sphi 0, %s17
    %s20 = sphi 0, %s18
    %s21 = sphi 0, %s19
    %s22 = sphi 0, %s20
    %s34 = sphi 0, %s36
    %s37 = sphi 0, %s34
    %s38 = sphi 0, %s37
    %s54 = sphi 0, %s38
    %s62 = sphi 0, %s64
    %s65 = sphi 0, %s62
    %s66 = sphi 0, %s65
    %s82 = sphi 0, %s66
    %s88 = sphi 0, %s90
    %s91 = sphi 0, %s88
    %s92 = sphi 0, %s91
    %s108 = sphi 0, %s92
    %s114 = sphi 0, %s116
    %s117 = sphi 0, %s114
    %s118 = sphi 0, %s117
    %s134 = sphi 0, %s118
    %s140 = sphi 0, %s142
    %s143 = sphi 0, %s140
    %s144 = sphi 0, %s143
    %s160 = sphi 0, %s144
  $region4: #{exclus_loss.1} parent=0 // loop_header_branch
    %13 = sbr.rel (%p11) target = $region8
  $region5: #{exclus_loss.1} parent=0 // loop_body
    %s15 = ssub.s32 %s10, 1
    %s16 = ssub.s32 %s10, 2
    %s23 = sadd.s32 1, %s18
    %p24 = scmp.ge.s32.totalorder %s23, 1
    %s25 = scalar_select %p24, 0, %s23
    %s26 = sadd.s32 1, %s17
    %s27 = scalar_select %p24, %s26, %s17
    %p28 = scmp.ge.s32.totalorder %s27, 2
    %s29 = scalar_select %p28, 0, %s27
    %s30 = ssub.s32 %s17, %s29
    %s31 = ssub.s32 %s18, %s25
    %s32 = sor.u32 %s30, %s31
    %p33 = scmp.eq.s32.totalorder %s32, 0
    %s35 = sadd.s32 %s34, 1
    %s36 = scalar_select %p33, %s34, %s35
    %p39 = pneg %p33
    %p40 = scmp.eq.s32.totalorder %s10, 1
    %p41 = por %p39, %p40
    %p42 = scmp.ne.s32.totalorder %s34, %s37
    %p43 = scmp.eq.s32.totalorder %s10, 0
    %p44 = por %p42, %p43
    %p45 = scmp.ne.s32.totalorder %s34, %s37
    %p46 = scmp.eq.s32.totalorder %s15, 1
    %p47 = por %p45, %p46
    %p48 = scmp.ne.s32.totalorder %s37, %s38
    %p49 = scmp.eq.s32.totalorder %s15, 0
    %p50 = por %p48, %p49
    %p51 = scmp.ne.s32.totalorder %s37, %s38
    %p52 = scmp.eq.s32.totalorder %s16, 1
    %p53 = por %p51, %p52
    %p55 = scmp.ne.s32.totalorder %s38, %s54
    %p56 = scmp.eq.s32.totalorder %s16, 0
    %p57 = por %p55, %p56
    %s58 = ssub.s32 %s17, %s29
    %s59 = ssub.s32 %s18, %s25
    %s60 = sor.u32 %s58, %s59
    %p61 = scmp.eq.s32.totalorder %s60, 0
    %s63 = sadd.s32 %s62, 1
    %s64 = scalar_select %p61, %s62, %s63
    %p67 = pneg %p61
    %p68 = scmp.eq.s32.totalorder %s10, 1
    %p69 = por %p67, %p68
    %p70 = scmp.ne.s32.totalorder %s62, %s65
    %p71 = scmp.eq.s32.totalorder %s10, 0
    %p72 = por %p70, %p71
    %p73 = scmp.ne.s32.totalorder %s62, %s65
    %p74 = scmp.eq.s32.totalorder %s15, 1
    %p75 = por %p73, %p74
    %p76 = scmp.ne.s32.totalorder %s65, %s66
    %p77 = scmp.eq.s32.totalorder %s15, 0
    %p78 = por %p76, %p77
    %p79 = scmp.ne.s32.totalorder %s65, %s66
    %p80 = scmp.eq.s32.totalorder %s16, 1
    %p81 = por %p79, %p80
    %p83 = scmp.ne.s32.totalorder %s66, %s82
    %p84 = scmp.eq.s32.totalorder %s16, 0
    %p85 = por %p83, %p84
    %s86 = ssub.s32 %s17, %s29
    %p87 = scmp.eq.s32.totalorder %s86, 0
    %s89 = sadd.s32 %s88, 1
    %s90 = scalar_select %p87, %s88, %s89
    %p93 = pneg %p87
    %p94 = scmp.eq.s32.totalorder %s10, 1
    %p95 = por %p93, %p94
    %p96 = scmp.ne.s32.totalorder %s88, %s91
    %p97 = scmp.eq.s32.totalorder %s10, 0
    %p98 = por %p96, %p97
    %p99 = scmp.ne.s32.totalorder %s88, %s91
    %p100 = scmp.eq.s32.totalorder %s15, 1
    %p101 = por %p99, %p100
    %p102 = scmp.ne.s32.totalorder %s91, %s92
    %p103 = scmp.eq.s32.totalorder %s15, 0
    %p104 = por %p102, %p103
    %p105 = scmp.ne.s32.totalorder %s91, %s92
    %p106 = scmp.eq.s32.totalorder %s16, 1
    %p107 = por %p105, %p106
    %p109 = scmp.ne.s32.totalorder %s92, %s108
    %p110 = scmp.eq.s32.totalorder %s16, 0
    %p111 = por %p109, %p110
    %s112 = ssub.s32 %s17, %s29
    %p113 = scmp.eq.s32.totalorder %s112, 0
    %s115 = sadd.s32 %s114, 1
    %s116 = scalar_select %p113, %s114, %s115
    %p119 = pneg %p113
    %p120 = scmp.eq.s32.totalorder %s10, 1
    %p121 = por %p119, %p120
    %p122 = scmp.ne.s32.totalorder %s114, %s117
    %p123 = scmp.eq.s32.totalorder %s10, 0
    %p124 = por %p122, %p123
    %p125 = scmp.ne.s32.totalorder %s114, %s117
    %p126 = scmp.eq.s32.totalorder %s15, 1
    %p127 = por %p125, %p126
    %p128 = scmp.ne.s32.totalorder %s117, %s118
    %p129 = scmp.eq.s32.totalorder %s15, 0
    %p130 = por %p128, %p129
    %p131 = scmp.ne.s32.totalorder %s117, %s118
    %p132 = scmp.eq.s32.totalorder %s16, 1
    %p133 = por %p131, %p132
    %p135 = scmp.ne.s32.totalorder %s118, %s134
    %p136 = scmp.eq.s32.totalorder %s16, 0
    %p137 = por %p135, %p136
    %s138 = ssub.s32 %s17, %s29
    %p139 = scmp.eq.s32.totalorder %s138, 0
    %s141 = sadd.s32 %s140, 1
    %s142 = scalar_select %p139, %s140, %s141
    %p145 = pneg %p139
    %p146 = scmp.eq.s32.totalorder %s10, 1
    %p147 = por %p145, %p146
    %p148 = scmp.ne.s32.totalorder %s140, %s143
    %p149 = scmp.eq.s32.totalorder %s10, 0
    %p150 = por %p148, %p149
    %p151 = scmp.ne.s32.totalorder %s140, %s143
    %p152 = scmp.eq.s32.totalorder %s15, 1
    %p153 = por %p151, %p152
    %p154 = scmp.ne.s32.totalorder %s143, %s144
    %p155 = scmp.eq.s32.totalorder %s15, 0
    %p156 = por %p154, %p155
    %p157 = scmp.ne.s32.totalorder %s143, %s144
    %p158 = scmp.eq.s32.totalorder %s16, 1
    %p159 = por %p157, %p158
    %p161 = scmp.ne.s32.totalorder %s144, %s160
    %p162 = scmp.eq.s32.totalorder %s16, 0
    %p163 = por %p161, %p162
    %p164 = scmp.le.s32.totalorder 1, %s10
    %p165 = scmp.lt.s32.totalorder %s10, 3
    %p166 = pnand %p164, %p165
    %p167 = pneg %p166
    // Predicated region
    $region9: #{exclus_loss.1} parent=5 // pred_check
      _
    $region10: #{exclus_loss.1} parent=5 // pred_check_branch
      %169 = sbr.rel (%p166) target = $region12
    $region11: #{exclus_loss.1} parent=5 // pred_region
      %s170 = ssub.s32 %s10, 1
    $region12: #{exclus_loss.1} parent=5 // pred_fallthru
      _
    %p171 = scmp.lt.s32.totalorder %s10, 2
    // Predicated region
    $region13: #{exclus_loss.1} parent=5 // pred_check
      %p172 = pneg %p171
    $region14: #{exclus_loss.1} parent=5 // pred_check_branch
      %174 = sbr.rel (%p172) target = $region16
    $region15: #{exclus_loss.1} parent=5 // pred_region
      // Predicated region
      $region17: #{exclus_loss.1} parent=15 // pred_check
        %p175 = pneg %p44
      $region18: #{exclus_loss.1} parent=15 // pred_check_branch
        %177 = sbr.rel (%p175) target = $region20
      $region19: #{exclus_loss.1} parent=15 // pred_region
        %s178 = smul.u32 8, %s17
        %p179 = scmp.lt.s32.totalorder %s178, 15
        %s180 = scalar_select %p179, %s178, 15
        %p181 = scmp.lt.s32.totalorder %s18, 0
        %s182 = scalar_select %p181, %s18, 0
        %s183 = smul.addr %s180, 2
        %s184 = sadd.s32 %s182, %s183
        %s185 = smul.addr %s184, 4
        %s186 = scalar_lea.vmem %s0, %s185
        %s187 = smul.u32 8, %s17
      $region20: #{exclus_loss.1} parent=15 // pred_fallthru
        _
      // Predicated region
      $region21: #{exclus_loss.1} parent=15 // pred_check
        %p188 = pneg %p72
      $region22: #{exclus_loss.1} parent=15 // pred_check_branch
        %190 = sbr.rel (%p188) target = $region24
      $region23: #{exclus_loss.1} parent=15 // pred_region
        %s191 = smul.u32 8, %s17
        %p192 = scmp.lt.s32.totalorder %s191, 15
        %s193 = scalar_select %p192, %s191, 15
        %p194 = scmp.lt.s32.totalorder %s18, 0
        %s195 = scalar_select %p194, %s18, 0
        %s196 = smul.addr %s193, 2
        %s197 = sadd.s32 %s195, %s196
        %s198 = smul.addr %s197, 4
        %s199 = scalar_lea.vmem %s1, %s198
        %s200 = smul.u32 8, %s17
      $region24: #{exclus_loss.1} parent=15 // pred_fallthru
        _
      // Predicated region
      $region25: #{exclus_loss.1} parent=15 // pred_check
        %p201 = pneg %p98
      $region26: #{exclus_loss.1} parent=15 // pred_check_branch
        %203 = sbr.rel (%p201) target = $region28
      $region27: #{exclus_loss.1} parent=15 // pred_region
        %p204 = scmp.lt.s32.totalorder %s17, 1
        %s205 = scalar_select %p204, %s17, 1
        %s206 = smul.addr %s205, 8
        %s207 = scalar_lea.vmem %s2, %s206
      $region28: #{exclus_loss.1} parent=15 // pred_fallthru
        _
      // Predicated region
      $region29: #{exclus_loss.1} parent=15 // pred_check
        %p208 = pneg %p124
      $region30: #{exclus_loss.1} parent=15 // pred_check_branch
        %210 = sbr.rel (%p208) target = $region32
      $region31: #{exclus_loss.1} parent=15 // pred_region
        %p211 = scmp.lt.s32.totalorder %s17, 1
        %s212 = scalar_select %p211, %s17, 1
        %s213 = smul.addr %s212, 8
        %s214 = scalar_lea.vmem %s3, %s213
      $region32: #{exclus_loss.1} parent=15 // pred_fallthru
        _
    $region16: #{exclus_loss.1} parent=5 // pred_fallthru
      _
    %p215 = scmp.le.s32.totalorder 1, %s10
    %p216 = scmp.lt.s32.totalorder %s10, 3
    %p217 = pnand %p215, %p216
    %p218 = pneg %p217
    // Predicated region
    $region33: #{exclus_loss.1} parent=5 // pred_check
      _
    $region34: #{exclus_loss.1} parent=5 // pred_check_branch
      %220 = sbr.rel (%p217) target = $region36
    $region35: #{exclus_loss.1} parent=5 // pred_region
      %s221 = ssub.s32 %s10, 1
      %s222 = smul.u32 8, %s19
      %p223 = scmp.lt.s32.totalorder %s222, 15
      %s224 = scalar_select %p223, %s222, 15
      %p225 = scmp.lt.s32.totalorder %s20, 0
      %s226 = scalar_select %p225, %s20, 0
      %s227 = smul.addr %s224, 2
      %s228 = sadd.s32 %s226, %s227
      %s229 = smul.addr %s228, 4
      %s230 = scalar_lea.vmem %s0, %s229
      %p231 = pneg %p50
      %p232 = pneg %p47
      %s233 = smul.u32 8, %s19
      %p234 = scmp.lt.s32.totalorder %s233, 15
      %s235 = scalar_select %p234, %s233, 15
      %p236 = scmp.lt.s32.totalorder %s20, 0
      %s237 = scalar_select %p236, %s20, 0
      %s238 = smul.addr %s235, 2
      %s239 = sadd.s32 %s237, %s238
      %s240 = smul.addr %s239, 4
      %s241 = scalar_lea.vmem %s1, %s240
      %p242 = pneg %p78
      %p243 = pneg %p75
      %p244 = scmp.lt.s32.totalorder %s19, 1
      %s245 = scalar_select %p244, %s19, 1
      %s246 = smul.addr %s245, 8
      %s247 = scalar_lea.vmem %s2, %s246
      %p248 = pneg %p104
      %p249 = pneg %p101
      %p250 = scmp.lt.s32.totalorder %s19, 1
      %s251 = scalar_select %p250, %s19, 1
      %s252 = smul.addr %s251, 8
      %s253 = scalar_lea.vmem %s3, %s252
      %p254 = pneg %p130
      %p255 = pneg %p127
      %p256 = pneg %p156
      %p257 = pneg %p153
      %p258 = scmp.lt.s32.totalorder %s19, 1
      %s259 = scalar_select %p258, %s19, 1
      %s260 = smul.addr %s259, 8
      %s261 = scalar_lea.vmem %s4, %s260
      %s262 = smul.u32 8, %s19
      %p263 = scmp.lt.s32.totalorder %s262, 15
      %s264 = scalar_select %p263, %s262, 15
      %p265 = scmp.lt.s32.totalorder %s20, 0
      %s266 = scalar_select %p265, %s20, 0
      %s267 = smul.addr %s264, 2
      %s268 = sadd.s32 %s266, %s267
      %s269 = smul.addr %s268, 4
      %s270 = scalar_lea.vmem %s0, %s269
      %s271 = smul.u32 8, %s19
      %s272 = smul.u32 8, %s19
      %p273 = scmp.lt.s32.totalorder %s272, 15
      %s274 = scalar_select %p273, %s272, 15
      %p275 = scmp.lt.s32.totalorder %s20, 0
      %s276 = scalar_select %p275, %s20, 0
      %s277 = smul.addr %s274, 2
      %s278 = sadd.s32 %s276, %s277
      %s279 = smul.addr %s278, 4
      %s280 = scalar_lea.vmem %s1, %s279
      %s281 = smul.u32 8, %s19
      %p282 = scmp.lt.s32.totalorder %s19, 1
      %s283 = scalar_select %p282, %s19, 1
      %s284 = smul.addr %s283, 8
      %s285 = scalar_lea.vmem %s2, %s284
      %p286 = scmp.lt.s32.totalorder %s19, 1
      %s287 = scalar_select %p286, %s19, 1
      %s288 = smul.addr %s287, 8
      %s289 = scalar_lea.vmem %s3, %s288
      %p290 = scmp.lt.s32.totalorder %s19, 1
      %s291 = scalar_select %p290, %s19, 1
      %s292 = smul.addr %s291, 8
      %s293 = scalar_lea.vmem %s4, %s292
      %p294 = scmp.eq.s32.totalorder %s20, 0
      // Predicated region
      $region37: #{exclus_loss.1} parent=35 // pred_check
        %p295 = pneg %p294
      $region38: #{exclus_loss.1} parent=35 // pred_check_branch
        %297 = sbr.rel (%p295) target = $region40
      $region39: #{exclus_loss.1} parent=35 // pred_region
        %vm298 = vcmask 31744
        %299 = vst.msk [vmem:[#allocation2] sm:$0xff] %vm298, 0.0
        %300 = vst.msk [vmem:[#allocation3] sm:$0xff] %vm298, 0.0
        %301 = vst.msk [vmem:[#allocation4] sm:$0xff] %vm298, 0.0
        %302 = vst.msk [vmem:[#allocation5] sm:$0xff] %vm298, 0.0
        %303 = vst.msk [vmem:[#allocation6] sm:$0xff] %vm298, 0.0
        %304 = vst.msk [vmem:[#allocation7] sm:$0xff] %vm298, 0.0
      $region40: #{exclus_loss.1} parent=35 // pred_fallthru
        _
      %v305 = vld [vmem:[%s270] sm:$0xf]
      %v306 = vld [vmem:[%s270 + $0x8] sm:$0xf]
      %v307 = vld [vmem:[%s270 + $0x10] sm:$0xf]
      %v308 = vld [vmem:[%s270 + $0x18] sm:$0xf]
      %v309 = vld [vmem:[%s270 + $0x20] sm:$0xf]
      %v310 = vld [vmem:[%s270 + $0x28] sm:$0xf]
      %v311 = vld [vmem:[%s270 + $0x30] sm:$0xf]
      %v312 = vld [vmem:[%s270 + $0x38] sm:$0xf]
      %s313 = scalar_lea.vmem %s270, 4
      %v314 = vld [vmem:[%s313] sm:$0xf]
      %v315 = vld [vmem:[%s313 + $0x8] sm:$0xf]
      %v316 = vld [vmem:[%s313 + $0x10] sm:$0xf]
      %v317 = vld [vmem:[%s313 + $0x18] sm:$0xf]
      %v318 = vld [vmem:[%s313 + $0x20] sm:$0xf]
      %v319 = vld [vmem:[%s313 + $0x28] sm:$0xf]
      %v320 = vld [vmem:[%s313 + $0x30] sm:$0xf]
      %v321 = vld [vmem:[%s313 + $0x38] sm:$0xf]
      %v322 = vld [vmem:[%s280] sm:$0xf]
      %v323 = vld [vmem:[%s280 + $0x8] sm:$0xf]
      %v324 = vld [vmem:[%s280 + $0x10] sm:$0xf]
      %v325 = vld [vmem:[%s280 + $0x18] sm:$0xf]
      %v326 = vld [vmem:[%s280 + $0x20] sm:$0xf]
      %v327 = vld [vmem:[%s280 + $0x28] sm:$0xf]
      %v328 = vld [vmem:[%s280 + $0x30] sm:$0xf]
      %v329 = vld [vmem:[%s280 + $0x38] sm:$0xf]
      %s330 = scalar_lea.vmem %s280, 4
      %v331 = vld [vmem:[%s330] sm:$0xf]
      %v332 = vld [vmem:[%s330 + $0x8] sm:$0xf]
      %v333 = vld [vmem:[%s330 + $0x10] sm:$0xf]
      %v334 = vld [vmem:[%s330 + $0x18] sm:$0xf]
      %v335 = vld [vmem:[%s330 + $0x20] sm:$0xf]
      %v336 = vld [vmem:[%s330 + $0x28] sm:$0xf]
      %v337 = vld [vmem:[%s330 + $0x30] sm:$0xf]
      %v338 = vld [vmem:[%s330 + $0x38] sm:$0xf]
      %v339 = vsub.f32 1.0, %v314
      %v340 = vsub.f32 1.0, %v315
      %v341 = vsub.f32 1.0, %v316
      %v342 = vsub.f32 1.0, %v317
      %v343 = vsub.f32 1.0, %v318
      %v344 = vsub.f32 1.0, %v319
      %v345 = vsub.f32 1.0, %v320
      %v346 = vsub.f32 1.0, %v321
      %v347 = vsub.f32 1.0, %v331
      %v348 = vsub.f32 1.0, %v332
      %v349 = vsub.f32 1.0, %v333
      %v350 = vsub.f32 1.0, %v334
      %v351 = vsub.f32 1.0, %v335
      %v352 = vsub.f32 1.0, %v336
      %v353 = vsub.f32 1.0, %v337
      %v354 = vsub.f32 1.0, %v338
      %v355 = vld [vmem:[#allocation2] sm:$0xff]
      %v356 = vmul.f32 %v322, %v339
      %v357 = vmul.f32 %v323, %v340
      %v358 = vmul.f32 %v324, %v341
      %v359 = vmul.f32 %v325, %v342
      %v360 = vmul.f32 %v326, %v343
      %v361 = vmul.f32 %v327, %v344
      %v362 = vmul.f32 %v328, %v345
      %v363 = vmul.f32 %v329, %v346
      %vm364 = vcmask 27648
      %v365 = vsel %vm364, %v356, 0.0
      %v366 = vrot.slane %v365, 4
      %v367 = vadd.f32 %v365, %v366
      %v368 = vrot.slane %v367, 2
      %v369 = vadd.f32 %v367, %v368
      %v370 = vrot.slane %v369, 1
      %v371 = vadd.f32 %v369, %v370
      %v372 = vsel %vm364, %v357, 0.0
      %v373 = vrot.slane %v372, 4
      %v374 = vadd.f32 %v372, %v373
      %v375 = vrot.slane %v374, 2
      %v376 = vadd.f32 %v374, %v375
      %v377 = vrot.slane %v376, 1
      %v378 = vadd.f32 %v376, %v377
      %v379 = vsel %vm364, %v358, 0.0
      %v380 = vrot.slane %v379, 4
      %v381 = vadd.f32 %v379, %v380
      %v382 = vrot.slane %v381, 2
      %v383 = vadd.f32 %v381, %v382
      %v384 = vrot.slane %v383, 1
      %v385 = vadd.f32 %v383, %v384
      %v386 = vsel %vm364, %v359, 0.0
      %v387 = vrot.slane %v386, 4
      %v388 = vadd.f32 %v386, %v387
      %v389 = vrot.slane %v388, 2
      %v390 = vadd.f32 %v388, %v389
      %v391 = vrot.slane %v390, 1
      %v392 = vadd.f32 %v390, %v391
      %v393 = vsel %vm364, %v360, 0.0
      %v394 = vrot.slane %v393, 4
      %v395 = vadd.f32 %v393, %v394
      %v396 = vrot.slane %v395, 2
      %v397 = vadd.f32 %v395, %v396
      %v398 = vrot.slane %v397, 1
      %v399 = vadd.f32 %v397, %v398
      %v400 = vsel %vm364, %v361, 0.0
      %v401 = vrot.slane %v400, 4
      %v402 = vadd.f32 %v400, %v401
      %v403 = vrot.slane %v402, 2
      %v404 = vadd.f32 %v402, %v403
      %v405 = vrot.slane %v404, 1
      %v406 = vadd.f32 %v404, %v405
      %v407 = vsel %vm364, %v362, 0.0
      %v408 = vrot.slane %v407, 4
      %v409 = vadd.f32 %v407, %v408
      %v410 = vrot.slane %v409, 2
      %v411 = vadd.f32 %v409, %v410
      %v412 = vrot.slane %v411, 1
      %v413 = vadd.f32 %v411, %v412
      %v414 = vsel %vm364, %v363, 0.0
      %v415 = vrot.slane %v414, 4
      %v416 = vadd.f32 %v414, %v415
      %v417 = vrot.slane %v416, 2
      %v418 = vadd.f32 %v416, %v417
      %v419 = vrot.slane %v418, 1
      %v420 = vadd.f32 %v418, %v419
      %vm429 = vcmask 1041409
      %v430 = vsel %vm429, %v378, %v371
      %vm431 = vcmask 1042434
      %v432 = vsel %vm431, %v385, %v430
      %vm433 = vcmask 1043459
      %v434 = vsel %vm433, %v392, %v432
      %vm435 = vcmask 1044484
      %v436 = vsel %vm435, %v399, %v434
      %vm437 = vcmask 1045509
      %v438 = vsel %vm437, %v406, %v436
      %vm439 = vcmask 1046534
      %v440 = vsel %vm439, %v413, %v438
      %vm441 = vcmask 1047559
      %v442 = vsel %vm441, %v420, %v440
      %v444 = vadd.f32 %v355, %v442
      %vm445 = vcmask 31744
      %446 = vst.msk [vmem:[#allocation2] sm:$0xff] %vm445, %v444
      %v447 = vld [vmem:[#allocation3] sm:$0xff]
      %v448 = vmul.f32 %v331, %v339
      %v449 = vmul.f32 %v332, %v340
      %v450 = vmul.f32 %v333, %v341
      %v451 = vmul.f32 %v334, %v342
      %v452 = vmul.f32 %v335, %v343
      %v453 = vmul.f32 %v336, %v344
      %v454 = vmul.f32 %v337, %v345
      %v455 = vmul.f32 %v338, %v346
      %v456 = vsel %vm364, %v448, 0.0
      %v457 = vrot.slane %v456, 4
      %v458 = vadd.f32 %v456, %v457
      %v459 = vrot.slane %v458, 2
      %v460 = vadd.f32 %v458, %v459
      %v461 = vrot.slane %v460, 1
      %v462 = vadd.f32 %v460, %v461
      %v463 = vsel %vm364, %v449, 0.0
      %v464 = vrot.slane %v463, 4
      %v465 = vadd.f32 %v463, %v464
      %v466 = vrot.slane %v465, 2
      %v467 = vadd.f32 %v465, %v466
      %v468 = vrot.slane %v467, 1
      %v469 = vadd.f32 %v467, %v468
      %v470 = vsel %vm364, %v450, 0.0
      %v471 = vrot.slane %v470, 4
      %v472 = vadd.f32 %v470, %v471
      %v473 = vrot.slane %v472, 2
      %v474 = vadd.f32 %v472, %v473
      %v475 = vrot.slane %v474, 1
      %v476 = vadd.f32 %v474, %v475
      %v477 = vsel %vm364, %v451, 0.0
      %v478 = vrot.slane %v477, 4
      %v479 = vadd.f32 %v477, %v478
      %v480 = vrot.slane %v479, 2
      %v481 = vadd.f32 %v479, %v480
      %v482 = vrot.slane %v481, 1
      %v483 = vadd.f32 %v481, %v482
      %v484 = vsel %vm364, %v452, 0.0
      %v485 = vrot.slane %v484, 4
      %v486 = vadd.f32 %v484, %v485
      %v487 = vrot.slane %v486, 2
      %v488 = vadd.f32 %v486, %v487
      %v489 = vrot.slane %v488, 1
      %v490 = vadd.f32 %v488, %v489
      %v491 = vsel %vm364, %v453, 0.0
      %v492 = vrot.slane %v491, 4
      %v493 = vadd.f32 %v491, %v492
      %v494 = vrot.slane %v493, 2
      %v495 = vadd.f32 %v493, %v494
      %v496 = vrot.slane %v495, 1
      %v497 = vadd.f32 %v495, %v496
      %v498 = vsel %vm364, %v454, 0.0
      %v499 = vrot.slane %v498, 4
      %v500 = vadd.f32 %v498, %v499
      %v501 = vrot.slane %v500, 2
      %v502 = vadd.f32 %v500, %v501
      %v503 = vrot.slane %v502, 1
      %v504 = vadd.f32 %v502, %v503
      %v505 = vsel %vm364, %v455, 0.0
      %v506 = vrot.slane %v505, 4
      %v507 = vadd.f32 %v505, %v506
      %v508 = vrot.slane %v507, 2
      %v509 = vadd.f32 %v507, %v508
      %v510 = vrot.slane %v509, 1
      %v511 = vadd.f32 %v509, %v510
      %v520 = vsel %vm429, %v469, %v462
      %v521 = vsel %vm431, %v476, %v520
      %v522 = vsel %vm433, %v483, %v521
      %v523 = vsel %vm435, %v490, %v522
      %v524 = vsel %vm437, %v497, %v523
      %v525 = vsel %vm439, %v504, %v524
      %v526 = vsel %vm441, %v511, %v525
      %v528 = vadd.f32 %v447, %v526
      %529 = vst.msk [vmem:[#allocation3] sm:$0xff] %vm445, %v528
      %v530 = vld [vmem:[#allocation4] sm:$0xff]
      %v531 = vmul.f32 %v305, %v347
      %v532 = vmul.f32 %v306, %v348
      %v533 = vmul.f32 %v307, %v349
      %v534 = vmul.f32 %v308, %v350
      %v535 = vmul.f32 %v309, %v351
      %v536 = vmul.f32 %v310, %v352
      %v537 = vmul.f32 %v311, %v353
      %v538 = vmul.f32 %v312, %v354
      %v539 = vsel %vm364, %v531, 0.0
      %v540 = vrot.slane %v539, 4
      %v541 = vadd.f32 %v539, %v540
      %v542 = vrot.slane %v541, 2
      %v543 = vadd.f32 %v541, %v542
      %v544 = vrot.slane %v543, 1
      %v545 = vadd.f32 %v543, %v544
      %v546 = vsel %vm364, %v532, 0.0
      %v547 = vrot.slane %v546, 4
      %v548 = vadd.f32 %v546, %v547
      %v549 = vrot.slane %v548, 2
      %v550 = vadd.f32 %v548, %v549
      %v551 = vrot.slane %v550, 1
      %v552 = vadd.f32 %v550, %v551
      %v553 = vsel %vm364, %v533, 0.0
      %v554 = vrot.slane %v553, 4
      %v555 = vadd.f32 %v553, %v554
      %v556 = vrot.slane %v555, 2
      %v557 = vadd.f32 %v555, %v556
      %v558 = vrot.slane %v557, 1
      %v559 = vadd.f32 %v557, %v558
      %v560 = vsel %vm364, %v534, 0.0
      %v561 = vrot.slane %v560, 4
      %v562 = vadd.f32 %v560, %v561
      %v563 = vrot.slane %v562, 2
      %v564 = vadd.f32 %v562, %v563
      %v565 = vrot.slane %v564, 1
      %v566 = vadd.f32 %v564, %v565
      %v567 = vsel %vm364, %v535, 0.0
      %v568 = vrot.slane %v567, 4
      %v569 = vadd.f32 %v567, %v568
      %v570 = vrot.slane %v569, 2
      %v571 = vadd.f32 %v569, %v570
      %v572 = vrot.slane %v571, 1
      %v573 = vadd.f32 %v571, %v572
      %v574 = vsel %vm364, %v536, 0.0
      %v575 = vrot.slane %v574, 4
      %v576 = vadd.f32 %v574, %v575
      %v577 = vrot.slane %v576, 2
      %v578 = vadd.f32 %v576, %v577
      %v579 = vrot.slane %v578, 1
      %v580 = vadd.f32 %v578, %v579
      %v581 = vsel %vm364, %v537, 0.0
      %v582 = vrot.slane %v581, 4
      %v583 = vadd.f32 %v581, %v582
      %v584 = vrot.slane %v583, 2
      %v585 = vadd.f32 %v583, %v584
      %v586 = vrot.slane %v585, 1
      %v587 = vadd.f32 %v585, %v586
      %v588 = vsel %vm364, %v538, 0.0
      %v589 = vrot.slane %v588, 4
      %v590 = vadd.f32 %v588, %v589
      %v591 = vrot.slane %v590, 2
      %v592 = vadd.f32 %v590, %v591
      %v593 = vrot.slane %v592, 1
      %v594 = vadd.f32 %v592, %v593
      %v603 = vsel %vm429, %v552, %v545
      %v604 = vsel %vm431, %v559, %v603
      %v605 = vsel %vm433, %v566, %v604
      %v606 = vsel %vm435, %v573, %v605
      %v607 = vsel %vm437, %v580, %v606
      %v608 = vsel %vm439, %v587, %v607
      %v609 = vsel %vm441, %v594, %v608
      %v611 = vadd.f32 %v530, %v609
      %612 = vst.msk [vmem:[#allocation4] sm:$0xff] %vm445, %v611
      %v613 = vld [vmem:[#allocation5] sm:$0xff]
      %v614 = vmul.f32 %v314, %v347
      %v615 = vmul.f32 %v315, %v348
      %v616 = vmul.f32 %v316, %v349
      %v617 = vmul.f32 %v317, %v350
      %v618 = vmul.f32 %v318, %v351
      %v619 = vmul.f32 %v319, %v352
      %v620 = vmul.f32 %v320, %v353
      %v621 = vmul.f32 %v321, %v354
      %v622 = vsel %vm364, %v614, 0.0
      %v623 = vrot.slane %v622, 4
      %v624 = vadd.f32 %v622, %v623
      %v625 = vrot.slane %v624, 2
      %v626 = vadd.f32 %v624, %v625
      %v627 = vrot.slane %v626, 1
      %v628 = vadd.f32 %v626, %v627
      %v629 = vsel %vm364, %v615, 0.0
      %v630 = vrot.slane %v629, 4
      %v631 = vadd.f32 %v629, %v630
      %v632 = vrot.slane %v631, 2
      %v633 = vadd.f32 %v631, %v632
      %v634 = vrot.slane %v633, 1
      %v635 = vadd.f32 %v633, %v634
      %v636 = vsel %vm364, %v616, 0.0
      %v637 = vrot.slane %v636, 4
      %v638 = vadd.f32 %v636, %v637
      %v639 = vrot.slane %v638, 2
      %v640 = vadd.f32 %v638, %v639
      %v641 = vrot.slane %v640, 1
      %v642 = vadd.f32 %v640, %v641
      %v643 = vsel %vm364, %v617, 0.0
      %v644 = vrot.slane %v643, 4
      %v645 = vadd.f32 %v643, %v644
      %v646 = vrot.slane %v645, 2
      %v647 = vadd.f32 %v645, %v646
      %v648 = vrot.slane %v647, 1
      %v649 = vadd.f32 %v647, %v648
      %v650 = vsel %vm364, %v618, 0.0
      %v651 = vrot.slane %v650, 4
      %v652 = vadd.f32 %v650, %v651
      %v653 = vrot.slane %v652, 2
      %v654 = vadd.f32 %v652, %v653
      %v655 = vrot.slane %v654, 1
      %v656 = vadd.f32 %v654, %v655
      %v657 = vsel %vm364, %v619, 0.0
      %v658 = vrot.slane %v657, 4
      %v659 = vadd.f32 %v657, %v658
      %v660 = vrot.slane %v659, 2
      %v661 = vadd.f32 %v659, %v660
      %v662 = vrot.slane %v661, 1
      %v663 = vadd.f32 %v661, %v662
      %v664 = vsel %vm364, %v620, 0.0
      %v665 = vrot.slane %v664, 4
      %v666 = vadd.f32 %v664, %v665
      %v667 = vrot.slane %v666, 2
      %v668 = vadd.f32 %v666, %v667
      %v669 = vrot.slane %v668, 1
      %v670 = vadd.f32 %v668, %v669
      %v671 = vsel %vm364, %v621, 0.0
      %v672 = vrot.slane %v671, 4
      %v673 = vadd.f32 %v671, %v672
      %v674 = vrot.slane %v673, 2
      %v675 = vadd.f32 %v673, %v674
      %v676 = vrot.slane %v675, 1
      %v677 = vadd.f32 %v675, %v676
      %v686 = vsel %vm429, %v635, %v628
      %v687 = vsel %vm431, %v642, %v686
      %v688 = vsel %vm433, %v649, %v687
      %v689 = vsel %vm435, %v656, %v688
      %v690 = vsel %vm437, %v663, %v689
      %v691 = vsel %vm439, %v670, %v690
      %v692 = vsel %vm441, %v677, %v691
      %v694 = vadd.f32 %v613, %v692
      %695 = vst.msk [vmem:[#allocation5] sm:$0xff] %vm445, %v694
      %v696 = vld [vmem:[#allocation6] sm:$0xff]
      %v697 = vmin.f32 %v314, %v331
      %v698 = vmin.f32 %v315, %v332
      %v699 = vmin.f32 %v316, %v333
      %v700 = vmin.f32 %v317, %v334
      %v701 = vmin.f32 %v318, %v335
      %v702 = vmin.f32 %v319, %v336
      %v703 = vmin.f32 %v320, %v337
      %v704 = vmin.f32 %v321, %v338
      %v705 = vsel %vm364, %v697, 0.0
      %v706 = vrot.slane %v705, 4
      %v707 = vadd.f32 %v705, %v706
      %v708 = vrot.slane %v707, 2
      %v709 = vadd.f32 %v707, %v708
      %v710 = vrot.slane %v709, 1
      %v711 = vadd.f32 %v709, %v710
      %v712 = vsel %vm364, %v698, 0.0
      %v713 = vrot.slane %v712, 4
      %v714 = vadd.f32 %v712, %v713
      %v715 = vrot.slane %v714, 2
      %v716 = vadd.f32 %v714, %v715
      %v717 = vrot.slane %v716, 1
      %v718 = vadd.f32 %v716, %v717
      %v719 = vsel %vm364, %v699, 0.0
      %v720 = vrot.slane %v719, 4
      %v721 = vadd.f32 %v719, %v720
      %v722 = vrot.slane %v721, 2
      %v723 = vadd.f32 %v721, %v722
      %v724 = vrot.slane %v723, 1
      %v725 = vadd.f32 %v723, %v724
      %v726 = vsel %vm364, %v700, 0.0
      %v727 = vrot.slane %v726, 4
      %v728 = vadd.f32 %v726, %v727
      %v729 = vrot.slane %v728, 2
      %v730 = vadd.f32 %v728, %v729
      %v731 = vrot.slane %v730, 1
      %v732 = vadd.f32 %v730, %v731
      %v733 = vsel %vm364, %v701, 0.0
      %v734 = vrot.slane %v733, 4
      %v735 = vadd.f32 %v733, %v734
      %v736 = vrot.slane %v735, 2
      %v737 = vadd.f32 %v735, %v736
      %v738 = vrot.slane %v737, 1
      %v739 = vadd.f32 %v737, %v738
      %v740 = vsel %vm364, %v702, 0.0
      %v741 = vrot.slane %v740, 4
      %v742 = vadd.f32 %v740, %v741
      %v743 = vrot.slane %v742, 2
      %v744 = vadd.f32 %v742, %v743
      %v745 = vrot.slane %v744, 1
      %v746 = vadd.f32 %v744, %v745
      %v747 = vsel %vm364, %v703, 0.0
      %v748 = vrot.slane %v747, 4
      %v749 = vadd.f32 %v747, %v748
      %v750 = vrot.slane %v749, 2
      %v751 = vadd.f32 %v749, %v750
      %v752 = vrot.slane %v751, 1
      %v753 = vadd.f32 %v751, %v752
      %v754 = vsel %vm364, %v704, 0.0
      %v755 = vrot.slane %v754, 4
      %v756 = vadd.f32 %v754, %v755
      %v757 = vrot.slane %v756, 2
      %v758 = vadd.f32 %v756, %v757
      %v759 = vrot.slane %v758, 1
      %v760 = vadd.f32 %v758, %v759
      %v769 = vsel %vm429, %v718, %v711
      %v770 = vsel %vm431, %v725, %v769
      %v771 = vsel %vm433, %v732, %v770
      %v772 = vsel %vm435, %v739, %v771
      %v773 = vsel %vm437, %v746, %v772
      %v774 = vsel %vm439, %v753, %v773
      %v775 = vsel %vm441, %v760, %v774
      %v777 = vadd.f32 %v696, %v775
      %778 = vst.msk [vmem:[#allocation6] sm:$0xff] %vm445, %v777
      %v779 = vld [vmem:[#allocation7] sm:$0xff]
      %v780 = vmax.f32 %v314, %v331
      %v781 = vmax.f32 %v315, %v332
      %v782 = vmax.f32 %v316, %v333
      %v783 = vmax.f32 %v317, %v334
      %v784 = vmax.f32 %v318, %v335
      %v785 = vmax.f32 %v319, %v336
      %v786 = vmax.f32 %v320, %v337
      %v787 = vmax.f32 %v321, %v338
      %v788 = vsel %vm364, %v780, 0.0
      %v789 = vrot.slane %v788, 4
      %v790 = vadd.f32 %v788, %v789
      %v791 = vrot.slane %v790, 2
      %v792 = vadd.f32 %v790, %v791
      %v793 = vrot.slane %v792, 1
      %v794 = vadd.f32 %v792, %v793
      %v795 = vsel %vm364, %v781, 0.0
      %v796 = vrot.slane %v795, 4
      %v797 = vadd.f32 %v795, %v796
      %v798 = vrot.slane %v797, 2
      %v799 = vadd.f32 %v797, %v798
      %v800 = vrot.slane %v799, 1
      %v801 = vadd.f32 %v799, %v800
      %v802 = vsel %vm364, %v782, 0.0
      %v803 = vrot.slane %v802, 4
      %v804 = vadd.f32 %v802, %v803
      %v805 = vrot.slane %v804, 2
      %v806 = vadd.f32 %v804, %v805
      %v807 = vrot.slane %v806, 1
      %v808 = vadd.f32 %v806, %v807
      %v809 = vsel %vm364, %v783, 0.0
      %v810 = vrot.slane %v809, 4
      %v811 = vadd.f32 %v809, %v810
      %v812 = vrot.slane %v811, 2
      %v813 = vadd.f32 %v811, %v812
      %v814 = vrot.slane %v813, 1
      %v815 = vadd.f32 %v813, %v814
      %v816 = vsel %vm364, %v784, 0.0
      %v817 = vrot.slane %v816, 4
      %v818 = vadd.f32 %v816, %v817
      %v819 = vrot.slane %v818, 2
      %v820 = vadd.f32 %v818, %v819
      %v821 = vrot.slane %v820, 1
      %v822 = vadd.f32 %v820, %v821
      %v823 = vsel %vm364, %v785, 0.0
      %v824 = vrot.slane %v823, 4
      %v825 = vadd.f32 %v823, %v824
      %v826 = vrot.slane %v825, 2
      %v827 = vadd.f32 %v825, %v826
      %v828 = vrot.slane %v827, 1
      %v829 = vadd.f32 %v827, %v828
      %v830 = vsel %vm364, %v786, 0.0
      %v831 = vrot.slane %v830, 4
      %v832 = vadd.f32 %v830, %v831
      %v833 = vrot.slane %v832, 2
      %v834 = vadd.f32 %v832, %v833
      %v835 = vrot.slane %v834, 1
      %v836 = vadd.f32 %v834, %v835
      %v837 = vsel %vm364, %v787, 0.0
      %v838 = vrot.slane %v837, 4
      %v839 = vadd.f32 %v837, %v838
      %v840 = vrot.slane %v839, 2
      %v841 = vadd.f32 %v839, %v840
      %v842 = vrot.slane %v841, 1
      %v843 = vadd.f32 %v841, %v842
      %v852 = vsel %vm429, %v801, %v794
      %v853 = vsel %vm431, %v808, %v852
      %v854 = vsel %vm433, %v815, %v853
      %v855 = vsel %vm435, %v822, %v854
      %v856 = vsel %vm437, %v829, %v855
      %v857 = vsel %vm439, %v836, %v856
      %v858 = vsel %vm441, %v843, %v857
      %v860 = vadd.f32 %v779, %v858
      %861 = vst.msk [vmem:[#allocation7] sm:$0xff] %vm445, %v860
      // Predicated region
      $region41: #{exclus_loss.1} parent=35 // pred_check
        %p862 = pneg %p294
      $region42: #{exclus_loss.1} parent=35 // pred_check_branch
        %864 = sbr.rel (%p862) target = $region44
      $region43: #{exclus_loss.1} parent=35 // pred_region
        %v865 = vld [vmem:[%s285] sm:$0xff]
        %v866 = vld [vmem:[%s289] sm:$0xff]
        %v867 = vld [vmem:[#allocation2] sm:$0xff]
        %v868 = vsel %vm445, %v867, 0.0
        %869 = vadd.xlane.f32.xlu0 %v868
        %v870 = vpop.xlane.xlu0 %869
        %v871 = vmul.f32 %v870, 0.0625
        %v872 = vld [vmem:[#allocation3] sm:$0xff]
        %v873 = vsel %vm445, %v872, 0.0
        %874 = vadd.xlane.f32.xlu0 %v873
        %v875 = vpop.xlane.xlu0 %874
        %v876 = vmul.f32 %v875, 0.0625
        %v877 = vld [vmem:[#allocation4] sm:$0xff]
        %v878 = vsel %vm445, %v877, 0.0
        %879 = vadd.xlane.f32.xlu0 %v878
        %v880 = vpop.xlane.xlu0 %879
        %v881 = vmul.f32 %v880, 0.0625
        %v882 = vld [vmem:[#allocation5] sm:$0xff]
        %v883 = vsel %vm445, %v882, 0.0
        %884 = vadd.xlane.f32.xlu0 %v883
        %v885 = vpop.xlane.xlu0 %884
        %v886 = vmul.f32 %v885, 0.0625
        %v887 = vld [vmem:[#allocation6] sm:$0xff]
        %v888 = vsel %vm445, %v887, 0.0
        %889 = vadd.xlane.f32.xlu0 %v888
        %v890 = vpop.xlane.xlu0 %889
        %v891 = vld [vmem:[#allocation7] sm:$0xff]
        %v892 = vsel %vm445, %v891, 0.0
        %893 = vadd.xlane.f32.xlu0 %v892
        %v894 = vpop.xlane.xlu0 %893
        %v895 = vmax.f32 %v871, %v876
        %v896 = vsub.f32 %v871, %v895
        %v897 = vmul.f32 %v896, 1.442695
        %v898 = vpow.pop %v897
        %v899 = vsub.f32 %v876, %v895
        %v900 = vmul.f32 %v899, 1.442695
        %v901 = vpow.pop %v900
        %v902 = vadd.f32 %v898, %v901
        %v903 = vlog2.pop %v902
        %v904 = vmul.f32 %v903, 0.6931472
        %v905 = vadd.f32 %v895, %v904
        %v906 = vmul.f32 %v866, %v876
        %v907 = vsub.f32 1.0, %v866
        %v908 = vmul.f32 %v907, %v871
        %v909 = vadd.f32 %v906, %v908
        %v910 = vsub.f32 %v905, %v909
        %v911 = vmax.f32 %v881, %v886
        %v912 = vsub.f32 %v881, %v911
        %v913 = vmul.f32 %v912, 1.442695
        %v914 = vpow.pop %v913
        %v915 = vsub.f32 %v886, %v911
        %v916 = vmul.f32 %v915, 1.442695
        %v917 = vpow.pop %v916
        %v918 = vadd.f32 %v914, %v917
        %v919 = vlog2.pop %v918
        %v920 = vmul.f32 %v919, 0.6931472
        %v921 = vadd.f32 %v911, %v920
        %v922 = vmul.f32 %v865, %v886
        %v923 = vsub.f32 1.0, %v865
        %v924 = vmul.f32 %v923, %v881
        %v925 = vadd.f32 %v922, %v924
        %v926 = vsub.f32 %v921, %v925
        %v927 = vmul.f32 %v866, %v894
        %v928 = vlaneseq
        %v929 = vand.u32 %v928, 127
        %vm930 = vcmp.eq.s32.totalorder %v929, 0
        %932 = vset.pattern.permute.xlu0 0
        %933 = vperm.xlu0 %932, %v910
        %v934 = vpop.permute.xlu0 %933
        %v936 = vsel %vm930, %v934, 0.0
        %vm937 = vcmp.eq.s32.totalorder %v929, 1
        %939 = vset.pattern.permute.xlu0 0
        %940 = vperm.xlu0 %939, %v926
        %v941 = vpop.permute.xlu0 %940
        %v943 = vsel %vm937, %v941, 0.0
        %v944 = vadd.f32 %v936, %v943
        %vm945 = vcmp.eq.s32.totalorder %v929, 2
        %v946 = vsel %vm945, %v890, 0.0
        %v947 = vadd.f32 %v944, %v946
        %vm948 = vcmp.eq.s32.totalorder %v929, 3
        %950 = vset.pattern.permute.xlu0 0
        %951 = vperm.xlu0 %950, %v927
        %v952 = vpop.permute.xlu0 %951
        %v954 = vsel %vm948, %v952, 0.0
        %v955 = vadd.f32 %v947, %v954
        %vm956 = vcmp.eq.s32.totalorder %v929, 4
        %958 = vset.pattern.permute.xlu0 0
        %959 = vperm.xlu0 %958, %v866
        %v960 = vpop.permute.xlu0 %959
        %v962 = vsel %vm956, %v960, 0.0
        %v963 = vadd.f32 %v955, %v962
        %964 = vst [vmem:[%s293] sm:$0xff] %v963
      $region44: #{exclus_loss.1} parent=35 // pred_fallthru
        _
      %p965 = scmp.lt.s32.totalorder %s19, 1
      %s966 = scalar_select %p965, %s19, 1
      %s967 = smul.addr %s966, 8
      %s968 = scalar_lea.vmem %s4, %s967
      // Predicated region
      $region45: #{exclus_loss.1} parent=35 // pred_check
        %p969 = pneg %p153
      $region46: #{exclus_loss.1} parent=35 // pred_check_branch
        %971 = sbr.rel (%p969) target = $region48
      $region47: #{exclus_loss.1} parent=35 // pred_region
        _
      $region48: #{exclus_loss.1} parent=35 // pred_fallthru
        _
    $region36: #{exclus_loss.1} parent=5 // pred_fallthru
      _
    %p972 = scmp.le.s32.totalorder 2, %s10
    // Predicated region
    $region49: #{exclus_loss.1} parent=5 // pred_check
      %p973 = pneg %p972
    $region50: #{exclus_loss.1} parent=5 // pred_check_branch
      %975 = sbr.rel (%p973) target = $region52
    $region51: #{exclus_loss.1} parent=5 // pred_region
      %s976 = ssub.s32 %s10, 2
      // Predicated region
      $region53: #{exclus_loss.1} parent=51 // pred_check
        %p977 = pneg %p159
      $region54: #{exclus_loss.1} parent=51 // pred_check_branch
        %979 = sbr.rel (%p977) target = $region56
      $region55: #{exclus_loss.1} parent=51 // pred_region
        %p980 = scmp.lt.s32.totalorder %s21, 1
        %s981 = scalar_select %p980, %s21, 1
        %s982 = smul.addr %s981, 8
        %s983 = scalar_lea.vmem %s4, %s982
      $region56: #{exclus_loss.1} parent=51 // pred_fallthru
        _
    $region52: #{exclus_loss.1} parent=5 // pred_fallthru
      _
  $region6: #{exclus_loss.1} parent=0 // loop_footer
    %s14 = sadd.s32 1, %s10
  $region7: #{exclus_loss.1} parent=0 // loop_footer_branch
    %9 = sbr.rel target = $region3
  $region8: #{exclus_loss.1} parent=0 // loop_exit
    _

</llo_original>
